<compile_context>
chip_gen: v7x
topology: tpu7x:2x2x1
jax: 0.10.0
libtpu: 0.0.40
codegen_flags: <defaults>
</compile_context>

<pallas_src>
import jax
import jax.numpy as jnp
from jax.experimental import pallas as pl
from jax.experimental.pallas import tpu as pltpu


def _global_attention_kernel(tgt_ref, srcT_ref, src_ref, wctx_ref, attn_ref):
    # tgt_ref  : (1, idf, q_block)      target features, native layout
    # srcT_ref : (1, sourceL, idf)      sourceT^T  (for the score matmul)
    # src_ref  : (1, idf, sourceL)      sourceT    (for the weighted-context matmul)
    # wctx_ref : (1, idf, q_block)
    # attn_ref : (1, sourceL, q_block)
    tgt = tgt_ref[0]            # (idf, q)
    src_t = srcT_ref[0]         # (sourceL, idf)
    src = src_ref[0]            # (idf, sourceL)

    # Scores directly in (sourceL, q) layout: queryL stays on the lane axis,
    # sourceL sits on a single sublane tile -> cheap softmax, no transpose.
    s = jnp.dot(src_t, tgt, preferred_element_type=jnp.float32)      # (sourceL, q) f32

    # Softmax over sourceL (axis 0), all in f32.
    s = s - jnp.max(s, axis=0, keepdims=True)
    e = jnp.exp(s)
    denom = jnp.sum(e, axis=0, keepdims=True)                        # (1, q)
    p = e * pl.reciprocal(denom, approx=True)                        # (sourceL, q)

    # weightedContext = sourceT @ attn  -> (idf, q)
    wctx = jnp.dot(src, p.astype(src.dtype), preferred_element_type=jnp.float32)

    wctx_ref[0] = wctx.astype(wctx_ref.dtype)
    attn_ref[0] = p.astype(attn_ref.dtype)


def global_attention_general(inp, context, conv_weight, *, q_block=None,
                             compute_dtype=None):
    """Pallas implementation of GlobalAttentionGeneral.forward (mask=None).

    inp:         (B, idf, ih, iw)
    context:     (B, cdf, sourceL)
    conv_weight: (idf, cdf)   (1x1 conv weight, squeezed)

    compute_dtype: optionally cast the matmul operands (e.g. jnp.bfloat16) while
    keeping f32 accumulation and f32 softmax.

    Returns (weightedContext (B, idf, ih, iw), attn (B, sourceL, ih, iw)).
    """
    B, idf, ih, iw = inp.shape
    _, cdf, sourceL = context.shape
    queryL = ih * iw
    out_dtype = inp.dtype

    # 1x1 conv (bias=False) over (B, cdf, sourceL, 1) == per-batch W @ context.
    # Tiny GEMM (K = cdf) -> precompute once in XLA instead of every grid step.
    sourceT = jnp.einsum("oc,bcl->bol", conv_weight, context)        # (B, idf, sourceL)
    sourceT_T = jnp.transpose(sourceT, (0, 2, 1))                    # (B, sourceL, idf)

    # Target in native (B, idf, queryL) layout -- no wrapper HBM transpose pass.
    target = inp.reshape(B, idf, queryL)

    if compute_dtype is not None:
        target = target.astype(compute_dtype)
        sourceT = sourceT.astype(compute_dtype)
        sourceT_T = sourceT_T.astype(compute_dtype)

    # Pad queryL (lane axis) to a multiple of 128 so all stores are full-lane.
    q_pad = ((queryL + 127) // 128) * 128
    if q_pad != queryL:
        target = jnp.pad(target, ((0, 0), (0, 0), (0, q_pad - queryL)))

    if q_block is None:
        q_block = next(c for c in (512, 256, 128) if q_pad % c == 0)
    assert q_pad % q_block == 0
    nq = q_pad // q_block

    itemsize = jnp.dtype(target.dtype).itemsize
    bytes_accessed = (
        B * idf * q_pad * itemsize                      # target in
        + 2 * B * idf * sourceL * itemsize              # sourceT + sourceT^T in
        + B * idf * q_pad * jnp.dtype(out_dtype).itemsize       # wctx out
        + B * sourceL * q_pad * jnp.dtype(out_dtype).itemsize)  # attn out
    cost = pl.CostEstimate(
        flops=4 * B * idf * sourceL * q_pad,            # two matmuls
        transcendentals=B * sourceL * q_pad,            # exp
        bytes_accessed=bytes_accessed)

    wctx_p, attn_p = pl.pallas_call(
        _global_attention_kernel,
        out_shape=(
            jax.ShapeDtypeStruct((B, idf, q_pad), out_dtype),
            jax.ShapeDtypeStruct((B, sourceL, q_pad), out_dtype),
        ),
        grid_spec=pltpu.PrefetchScalarGridSpec(
            num_scalar_prefetch=0,
            grid=(B, nq),
            in_specs=[
                pl.BlockSpec((1, idf, q_block), lambda b, q: (b, 0, q)),
                pl.BlockSpec((1, sourceL, idf), lambda b, q: (b, 0, 0)),
                pl.BlockSpec((1, idf, sourceL), lambda b, q: (b, 0, 0)),
            ],
            out_specs=[
                pl.BlockSpec((1, idf, q_block), lambda b, q: (b, 0, q)),
                pl.BlockSpec((1, sourceL, q_block), lambda b, q: (b, 0, q)),
            ],
        ),
        compiler_params=pltpu.CompilerParams(
            dimension_semantics=("parallel", "parallel"),
            vmem_limit_bytes=32 * 1024 * 1024,
        ),
        cost_estimate=cost,
    )(target, sourceT_T, sourceT)

    # Strip queryL padding (no-op slice when already a multiple of 128).
    weightedContext = wctx_p[:, :, :queryL].reshape(B, idf, ih, iw)
    attn_out = attn_p[:, :, :queryL].reshape(B, sourceL, ih, iw)
    return weightedContext, attn_out


def _reference(inp, context, conv_weight):
    """Pure-JAX reference mirroring the PyTorch forward (mask=None)."""
    B, idf, ih, iw = inp.shape
    _, cdf, sourceL = context.shape
    queryL = ih * iw
    target = inp.reshape(B, idf, queryL)
    targetT = jnp.transpose(target, (0, 2, 1))                     # (B, queryL, idf)
    sourceT = jnp.einsum("oc,bcl->bol", conv_weight, context)      # (B, idf, sourceL)
    attn = jnp.einsum("bqi,bil->bql", targetT, sourceT)            # (B, queryL, sourceL)
    attn = jax.nn.softmax(attn, axis=-1)
    attnT = jnp.transpose(attn, (0, 2, 1))                         # (B, sourceL, queryL)
    wctx = jnp.einsum("bil,blq->biq", sourceT, attnT)              # (B, idf, queryL)
    return wctx.reshape(B, idf, ih, iw), attnT.reshape(B, sourceL, ih, iw)


if __name__ == "__main__":
    # Small deterministic shapes consistent with the module's forward:
    #   batch=2, idf=32 (query feature dim), cdf=4 (context feature dim),
    #   ih=iw=16 -> queryL=256 (multiple of 128), sourceL=8.
    B, idf, cdf, ih, iw, sourceL = 2, 32, 4, 16, 16, 8

    key = jax.random.PRNGKey(0)
    k_inp, k_ctx, k_w = jax.random.split(key, 3)
    inp = jax.random.normal(k_inp, (B, idf, ih, iw), dtype=jnp.float32)
    context = jax.random.normal(k_ctx, (B, cdf, sourceL), dtype=jnp.float32)
    # Deterministic init for conv_context (1x1 conv, bias=False): weight (idf, cdf)
    conv_weight = (jax.random.normal(k_w, (idf, cdf), dtype=jnp.float32)
                   * (1.0 / jnp.sqrt(cdf)))

    wctx, attn = global_attention_general(inp, context, conv_weight)
    jax.block_until_ready((wctx, attn))

    wctx_ref, attn_ref = _reference(inp, context, conv_weight)
    assert wctx.shape == (B, idf, ih, iw)
    assert attn.shape == (B, sourceL, ih, iw)
    # Tolerances account for the EUP approximate reciprocal in the softmax.
    assert jnp.allclose(wctx, wctx_ref, atol=5e-3, rtol=5e-3)
    assert jnp.allclose(attn, attn_ref, atol=5e-3, rtol=5e-3)

    print("KERNEL_OK")
</pallas_src>

<mosaic_0001>
module attributes {stable_mosaic.version = 11 : i64} {
  func.func @_global_attention_kernel(%arg0: i32, %arg1: i32, %arg2: memref<1x32x256xf32, #tpu.memory_space<vmem>>, %arg3: memref<1x8x32xf32, #tpu.memory_space<vmem>>, %arg4: memref<1x32x8xf32, #tpu.memory_space<vmem>>, %arg5: memref<1x32x256xf32, #tpu.memory_space<vmem>>, %arg6: memref<1x8x256xf32, #tpu.memory_space<vmem>>) attributes {dimension_semantics = [#tpu.dimension_semantics<parallel>, #tpu.dimension_semantics<parallel>], iteration_bounds = array<i64: 2, 1>, scalar_prefetch = 0 : i64, scratch_operands = 0 : i64, tpu.core_type = #tpu.core_type<tc>, window_params = [{transform_indices = @transform_0, window_bounds = array<i64: 1, 32, 256>}, {transform_indices = @transform_1, window_bounds = array<i64: 1, 8, 32>}, {transform_indices = @transform_2, window_bounds = array<i64: 1, 32, 8>}, {transform_indices = @transform_3, window_bounds = array<i64: 1, 32, 256>}, {transform_indices = @transform_4, window_bounds = array<i64: 1, 8, 256>}]} {
    %c0 = arith.constant 0 : index
    %c0_0 = arith.constant 0 : index
    %c0_1 = arith.constant 0 : index
    %0 = vector.load %arg2[%c0, %c0_0, %c0_1] : memref<1x32x256xf32, #tpu.memory_space<vmem>>, vector<1x32x256xf32>
    %1 = vector.shape_cast %0 : vector<1x32x256xf32> to vector<32x256xf32>
    %c0_2 = arith.constant 0 : index
    %c0_3 = arith.constant 0 : index
    %c0_4 = arith.constant 0 : index
    %2 = vector.load %arg3[%c0_2, %c0_3, %c0_4] : memref<1x8x32xf32, #tpu.memory_space<vmem>>, vector<1x8x32xf32>
    %3 = vector.shape_cast %2 : vector<1x8x32xf32> to vector<8x32xf32>
    %c0_5 = arith.constant 0 : index
    %c0_6 = arith.constant 0 : index
    %c0_7 = arith.constant 0 : index
    %4 = vector.load %arg4[%c0_5, %c0_6, %c0_7] : memref<1x32x8xf32, #tpu.memory_space<vmem>>, vector<1x32x8xf32>
    %5 = vector.shape_cast %4 : vector<1x32x8xf32> to vector<32x8xf32>
    %cst = arith.constant dense<0.000000e+00> : vector<8x256xf32>
    %6 = tpu.matmul %3, %1, %cst {dimension_numbers = #tpu.dot_dimension_numbers<[1], [0], [0], [1], [0, 0, 1, 1], [], []>} : vector<8x32xf32>, vector<32x256xf32>, vector<8x256xf32> -> vector<8x256xf32>
    %cst_8 = arith.constant dense<0xFF800000> : vector<256xf32>
    %7 = vector.multi_reduction <maximumf>, %6, %cst_8 [0] : vector<8x256xf32> to vector<256xf32>
    %8 = vector.shape_cast %7 : vector<256xf32> to vector<1x256xf32>
    %9 = vector.broadcast %8 : vector<1x256xf32> to vector<8x256xf32>
    %10 = arith.subf %6, %9 : vector<8x256xf32>
    %11 = math.exp %10 : vector<8x256xf32>
    %cst_9 = arith.constant dense<0.000000e+00> : vector<256xf32>
    %12 = vector.multi_reduction <add>, %11, %cst_9 [0] : vector<8x256xf32> to vector<256xf32>
    %13 = vector.shape_cast %12 : vector<256xf32> to vector<1x256xf32>
    %14 = tpu.reciprocal %13 {approx = true} : vector<1x256xf32> -> vector<1x256xf32>
    %15 = vector.broadcast %14 : vector<1x256xf32> to vector<8x256xf32>
    %16 = arith.mulf %11, %15 : vector<8x256xf32>
    %cst_10 = arith.constant dense<0.000000e+00> : vector<32x256xf32>
    %17 = tpu.matmul %5, %16, %cst_10 {dimension_numbers = #tpu.dot_dimension_numbers<[1], [0], [0], [1], [0, 0, 1, 1], [], []>} : vector<32x8xf32>, vector<8x256xf32>, vector<32x256xf32> -> vector<32x256xf32>
    %c0_11 = arith.constant 0 : index
    %c0_12 = arith.constant 0 : index
    %c0_13 = arith.constant 0 : index
    %18 = vector.load %arg5[%c0_11, %c0_12, %c0_13] : memref<1x32x256xf32, #tpu.memory_space<vmem>>, vector<1x32x256xf32>
    %19 = vector.shape_cast %18 : vector<1x32x256xf32> to vector<32x256xf32>
    %20 = vector.shape_cast %17 : vector<32x256xf32> to vector<1x32x256xf32>
    tpu.vector_store %arg5[%c0_11, %c0_12, %c0_13], %20 {strides = array<i32>} : memref<1x32x256xf32, #tpu.memory_space<vmem>>, vector<1x32x256xf32>,
    %c0_14 = arith.constant 0 : index
    %c0_15 = arith.constant 0 : index
    %c0_16 = arith.constant 0 : index
    %21 = vector.load %arg6[%c0_14, %c0_15, %c0_16] : memref<1x8x256xf32, #tpu.memory_space<vmem>>, vector<1x8x256xf32>
    %22 = vector.shape_cast %21 : vector<1x8x256xf32> to vector<8x256xf32>
    %23 = vector.shape_cast %16 : vector<8x256xf32> to vector<1x8x256xf32>
    tpu.vector_store %arg6[%c0_14, %c0_15, %c0_16], %23 {strides = array<i32>} : memref<1x8x256xf32, #tpu.memory_space<vmem>>, vector<1x8x256xf32>,
    return
  }
  func.func @transform_0(%arg0: i32, %arg1: i32) -> (i32, i32, i32) {
    %c0_i32 = arith.constant 0 : i32
    %c0_i32_0 = arith.constant 0 : i32
    return %arg0, %c0_i32, %arg1 : i32, i32, i32
  }
  func.func @transform_1(%arg0: i32, %arg1: i32) -> (i32, i32, i32) {
    %c0_i32 = arith.constant 0 : i32
    %c0_i32_0 = arith.constant 0 : i32
    %c0_i32_1 = arith.constant 0 : i32
    return %arg0, %c0_i32, %c0_i32_0 : i32, i32, i32
  }
  func.func @transform_2(%arg0: i32, %arg1: i32) -> (i32, i32, i32) {
    %c0_i32 = arith.constant 0 : i32
    %c0_i32_0 = arith.constant 0 : i32
    %c0_i32_1 = arith.constant 0 : i32
    return %arg0, %c0_i32, %c0_i32_0 : i32, i32, i32
  }
  func.func @transform_3(%arg0: i32, %arg1: i32) -> (i32, i32, i32) {
    %c0_i32 = arith.constant 0 : i32
    %c0_i32_0 = arith.constant 0 : i32
    return %arg0, %c0_i32, %arg1 : i32, i32, i32
  }
  func.func @transform_4(%arg0: i32, %arg1: i32) -> (i32, i32, i32) {
    %c0_i32 = arith.constant 0 : i32
    %c0_i32_0 = arith.constant 0 : i32
    return %arg0, %c0_i32, %arg1 : i32, i32, i32
  }
}

</mosaic_0001>

<llo_original>
// kernel: tpu_custom_call.1
$region0: #{tpu_custom_call.1}
  #allocation0 [shape = 'u32[]', space=smem, size = 0x4, offset = 0x4, fixed_abs, tag = 'smem constant byte address 0x4 - core index']
  #allocation1 [shape = 'u32[144,128]{1,0:T(1,128)}', space=vmem, size = 0x12000, scoped, tag = 'internal scratch']
  %s0 = inlined_call_operand.hbm [shape: f32[2,32,256], index: 0, kind: input, shape index: {}]
  %s1 = inlined_call_operand.vmem [shape: f32[2,8,32], index: 1, kind: input, shape index: {}]
  %s2 = inlined_call_operand.vmem [shape: f32[2,32,8], index: 2, kind: input, shape index: {}]
  %s3 = inlined_call_operand.hbm [shape: f32[2,32,256], index: 3, kind: output, shape index: {0}]
  %s4 = inlined_call_operand.hbm [shape: f32[2,8,256], index: 4, kind: output, shape index: {1}]
  %5 = xla_tuple %s3, %s4
  %s6 = sld [smem:[#allocation0]]
  $region57: #{tpu_custom_call.1} parent=0
    _
  %s8 = ssub.s32 1, %s6
  %s9 = scalar_select 0, %s8, %s6
  $region1: #{tpu_custom_call.1} parent=0
    #allocation2 [shape = 'u8[65536]{0}', space=vmem, size = 0x10000, scoped, tag = 'input window, operand 0']
    #allocation3 [shape = 's32[2]{0}', space=sflag, size = 0x8, scoped, tag = 'scoped memory for tpu_custom_call.1']
    #allocation4 [shape = 's32[2]{0}', space=sflag, size = 0x8, scoped, tag = 'scoped memory for tpu_custom_call.1']
    #allocation5 [shape = 'u8[65536]{0}', space=vmem, size = 0x10000, scoped, tag = 'output window, operand 0']
    #allocation6 [shape = 'u8[16384]{0}', space=vmem, size = 0x4000, scoped, tag = 'output window, operand 1']
    #allocation7 [shape = 's32[2]{0}', space=sflag, size = 0x8, scoped, tag = 'scoped memory for tpu_custom_call.1']
    %10 = vsyncpa [#allocation3], 0
    %s11 = scalar_lea.sflag [#allocation3], 1
    %12 = vsyncpa %s11, 0
    %13 = vsyncpa [#allocation4], 0
    %s14 = scalar_lea.sflag [#allocation4], 1
    %15 = vsyncpa %s14, 0
    %16 = vsyncpa [#allocation7], 0
    %s17 = scalar_lea.sflag [#allocation7], 1
    %18 = vsyncpa %s17, 0
    loop: start=0, step=1, limit=4
    $region2: #{tpu_custom_call.1} parent=1 // loop_pre_header
      _
    $region3: #{tpu_custom_call.1} parent=1 // loop_header
      %s20 = sphi 0, %s24
      %p21 = scmp.ge.s32.totalorder %s20, 4
      %s27 = sphi 0, %s39
      %s28 = sphi 0, %s35
      %s29 = sphi 0, %s27
      %s30 = sphi 0, %s28
      %s31 = sphi 0, %s29
      %s32 = sphi 0, %s30
      %s44 = sphi 0, %s46
      %s47 = sphi 0, %s44
      %s48 = sphi 0, %s47
      %s64 = sphi 0, %s48
      %s70 = sphi 0, %s72
      %s73 = sphi 0, %s70
      %s74 = sphi 0, %s73
      %s90 = sphi 0, %s74
      %s96 = sphi 0, %s98
      %s99 = sphi 0, %s96
      %s100 = sphi 0, %s99
      %s116 = sphi 0, %s100
      %s124 = sphi 0, %s126
      %s127 = sphi 0, %s124
      %s128 = sphi 0, %s127
      %s144 = sphi 0, %s128
      %s152 = sphi 0, %s154
      %s155 = sphi 0, %s152
      %s156 = sphi 0, %s155
      %s172 = sphi 0, %s156
    $region4: #{tpu_custom_call.1} parent=1 // loop_header_branch
      %23 = sbr.rel (%p21) target = $region8
    $region5: #{tpu_custom_call.1} parent=1 // loop_body
      %s25 = ssub.s32 %s20, 1
      %s26 = ssub.s32 %s20, 2
      %s33 = sadd.s32 1, %s28
      %p34 = scmp.ge.s32.totalorder %s33, 1
      %s35 = scalar_select %p34, 0, %s33
      %s36 = sadd.s32 1, %s27
      %s37 = scalar_select %p34, %s36, %s27
      %p38 = scmp.ge.s32.totalorder %s37, 2
      %s39 = scalar_select %p38, 0, %s37
      %s40 = ssub.s32 %s27, %s39
      %s41 = ssub.s32 %s28, %s35
      %s42 = sor.u32 %s40, %s41
      %p43 = scmp.eq.s32.totalorder %s42, 0
      %s45 = sadd.s32 %s44, 1
      %s46 = scalar_select %p43, %s44, %s45
      %p49 = pneg %p43
      %p50 = scmp.eq.s32.totalorder %s20, 1
      %p51 = por %p49, %p50
      %p52 = scmp.ne.s32.totalorder %s44, %s47
      %p53 = scmp.eq.s32.totalorder %s20, 0
      %p54 = por %p52, %p53
      %p55 = scmp.ne.s32.totalorder %s44, %s47
      %p56 = scmp.eq.s32.totalorder %s25, 1
      %p57 = por %p55, %p56
      %p58 = scmp.ne.s32.totalorder %s47, %s48
      %p59 = scmp.eq.s32.totalorder %s25, 0
      %p60 = por %p58, %p59
      %p61 = scmp.ne.s32.totalorder %s47, %s48
      %p62 = scmp.eq.s32.totalorder %s26, 1
      %p63 = por %p61, %p62
      %p65 = scmp.ne.s32.totalorder %s48, %s64
      %p66 = scmp.eq.s32.totalorder %s26, 0
      %p67 = por %p65, %p66
      %s68 = ssub.s32 %s27, %s39
      %p69 = scmp.eq.s32.totalorder %s68, 0
      %s71 = sadd.s32 %s70, 1
      %s72 = scalar_select %p69, %s70, %s71
      %p75 = pneg %p69
      %p76 = scmp.eq.s32.totalorder %s20, 1
      %p77 = por %p75, %p76
      %p78 = scmp.ne.s32.totalorder %s70, %s73
      %p79 = scmp.eq.s32.totalorder %s20, 0
      %p80 = por %p78, %p79
      %p81 = scmp.ne.s32.totalorder %s70, %s73
      %p82 = scmp.eq.s32.totalorder %s25, 1
      %p83 = por %p81, %p82
      %p84 = scmp.ne.s32.totalorder %s73, %s74
      %p85 = scmp.eq.s32.totalorder %s25, 0
      %p86 = por %p84, %p85
      %p87 = scmp.ne.s32.totalorder %s73, %s74
      %p88 = scmp.eq.s32.totalorder %s26, 1
      %p89 = por %p87, %p88
      %p91 = scmp.ne.s32.totalorder %s74, %s90
      %p92 = scmp.eq.s32.totalorder %s26, 0
      %p93 = por %p91, %p92
      %s94 = ssub.s32 %s27, %s39
      %p95 = scmp.eq.s32.totalorder %s94, 0
      %s97 = sadd.s32 %s96, 1
      %s98 = scalar_select %p95, %s96, %s97
      %p101 = pneg %p95
      %p102 = scmp.eq.s32.totalorder %s20, 1
      %p103 = por %p101, %p102
      %p104 = scmp.ne.s32.totalorder %s96, %s99
      %p105 = scmp.eq.s32.totalorder %s20, 0
      %p106 = por %p104, %p105
      %p107 = scmp.ne.s32.totalorder %s96, %s99
      %p108 = scmp.eq.s32.totalorder %s25, 1
      %p109 = por %p107, %p108
      %p110 = scmp.ne.s32.totalorder %s99, %s100
      %p111 = scmp.eq.s32.totalorder %s25, 0
      %p112 = por %p110, %p111
      %p113 = scmp.ne.s32.totalorder %s99, %s100
      %p114 = scmp.eq.s32.totalorder %s26, 1
      %p115 = por %p113, %p114
      %p117 = scmp.ne.s32.totalorder %s100, %s116
      %p118 = scmp.eq.s32.totalorder %s26, 0
      %p119 = por %p117, %p118
      %s120 = ssub.s32 %s27, %s39
      %s121 = ssub.s32 %s28, %s35
      %s122 = sor.u32 %s120, %s121
      %p123 = scmp.eq.s32.totalorder %s122, 0
      %s125 = sadd.s32 %s124, 1
      %s126 = scalar_select %p123, %s124, %s125
      %p129 = pneg %p123
      %p130 = scmp.eq.s32.totalorder %s20, 1
      %p131 = por %p129, %p130
      %p132 = scmp.ne.s32.totalorder %s124, %s127
      %p133 = scmp.eq.s32.totalorder %s20, 0
      %p134 = por %p132, %p133
      %p135 = scmp.ne.s32.totalorder %s124, %s127
      %p136 = scmp.eq.s32.totalorder %s25, 1
      %p137 = por %p135, %p136
      %p138 = scmp.ne.s32.totalorder %s127, %s128
      %p139 = scmp.eq.s32.totalorder %s25, 0
      %p140 = por %p138, %p139
      %p141 = scmp.ne.s32.totalorder %s127, %s128
      %p142 = scmp.eq.s32.totalorder %s26, 1
      %p143 = por %p141, %p142
      %p145 = scmp.ne.s32.totalorder %s128, %s144
      %p146 = scmp.eq.s32.totalorder %s26, 0
      %p147 = por %p145, %p146
      %s148 = ssub.s32 %s27, %s39
      %s149 = ssub.s32 %s28, %s35
      %s150 = sor.u32 %s148, %s149
      %p151 = scmp.eq.s32.totalorder %s150, 0
      %s153 = sadd.s32 %s152, 1
      %s154 = scalar_select %p151, %s152, %s153
      %p157 = pneg %p151
      %p158 = scmp.eq.s32.totalorder %s20, 1
      %p159 = por %p157, %p158
      %p160 = scmp.ne.s32.totalorder %s152, %s155
      %p161 = scmp.eq.s32.totalorder %s20, 0
      %p162 = por %p160, %p161
      %p163 = scmp.ne.s32.totalorder %s152, %s155
      %p164 = scmp.eq.s32.totalorder %s25, 1
      %p165 = por %p163, %p164
      %p166 = scmp.ne.s32.totalorder %s155, %s156
      %p167 = scmp.eq.s32.totalorder %s25, 0
      %p168 = por %p166, %p167
      %p169 = scmp.ne.s32.totalorder %s155, %s156
      %p170 = scmp.eq.s32.totalorder %s26, 1
      %p171 = por %p169, %p170
      %p173 = scmp.ne.s32.totalorder %s156, %s172
      %p174 = scmp.eq.s32.totalorder %s26, 0
      %p175 = por %p173, %p174
      %p176 = scmp.le.s32.totalorder 1, %s20
      %p177 = scmp.lt.s32.totalorder %s20, 3
      %p178 = pnand %p176, %p177
      %p179 = pneg %p178
      // Predicated region
      $region9: #{tpu_custom_call.1} parent=5 // pred_check
        _
      $region10: #{tpu_custom_call.1} parent=5 // pred_check_branch
        %181 = sbr.rel (%p178) target = $region12
      $region11: #{tpu_custom_call.1} parent=5 // pred_region
        %s182 = ssub.s32 %s20, 1
      $region12: #{tpu_custom_call.1} parent=5 // pred_fallthru
        _
      %p183 = scmp.lt.s32.totalorder %s20, 2
      // Predicated region
      $region13: #{tpu_custom_call.1} parent=5 // pred_check
        %p184 = pneg %p183
      $region14: #{tpu_custom_call.1} parent=5 // pred_check_branch
        %186 = sbr.rel (%p184) target = $region16
      $region15: #{tpu_custom_call.1} parent=5 // pred_region
        // Predicated region
        $region17: #{tpu_custom_call.1} parent=15 // pred_check
          %p187 = pneg %p54
        $region18: #{tpu_custom_call.1} parent=15 // pred_check_branch
          %189 = sbr.rel (%p187) target = $region20
        $region19: #{tpu_custom_call.1} parent=15 // pred_region
          %s190 = sand.u32 %s44, 1
          %s191 = scalar_lea.sflag [#allocation3], %s190
          %s192 = sand.u32 %s44, 1
          %s193 = smul.addr %s192, 64
          %s194 = scalar_lea.vmem [#allocation2], %s193
          %s195 = smul.u32 2, %s28
          %s197 = ssub.s32 1024, 1024
          %198 = vsyncadd %s191, %s197
          %s199 = smul.addr %s27, 8
          %s200 = sadd.s32 %s195, %s199
          %s201 = smul.addr %s200, 128
          %s202 = scalar_lea.hbm %s0, %s201
          %s203 = sshll.u32 %s194, 4
          %s204 = int_to_ptr.vmem [resolvable:$true] %s203
          %209 = dma.hbm_to_vmem [thread:$0]  %s202, 1024, %s204, %s191, 256, 256, 16
        $region20: #{tpu_custom_call.1} parent=15 // pred_fallthru
          _
        // Predicated region
        $region21: #{tpu_custom_call.1} parent=15 // pred_check
          %p210 = pneg %p80
        $region22: #{tpu_custom_call.1} parent=15 // pred_check_branch
          %212 = sbr.rel (%p210) target = $region24
        $region23: #{tpu_custom_call.1} parent=15 // pred_region
          %p213 = scmp.lt.s32.totalorder %s27, 1
          %s214 = scalar_select %p213, %s27, 1
          %s215 = smul.addr %s214, 8
          %s216 = scalar_lea.vmem %s1, %s215
        $region24: #{tpu_custom_call.1} parent=15 // pred_fallthru
          _
        // Predicated region
        $region25: #{tpu_custom_call.1} parent=15 // pred_check
          %p217 = pneg %p106
        $region26: #{tpu_custom_call.1} parent=15 // pred_check_branch
          %219 = sbr.rel (%p217) target = $region28
        $region27: #{tpu_custom_call.1} parent=15 // pred_region
          %p220 = scmp.lt.s32.totalorder %s27, 1
          %s221 = scalar_select %p220, %s27, 1
          %s222 = smul.addr %s221, 4
          %s223 = smul.addr %s222, 8
          %s224 = scalar_lea.vmem %s2, %s223
        $region28: #{tpu_custom_call.1} parent=15 // pred_fallthru
          _
      $region16: #{tpu_custom_call.1} parent=5 // pred_fallthru
        _
      %p225 = scmp.le.s32.totalorder 1, %s20
      %p226 = scmp.lt.s32.totalorder %s20, 3
      %p227 = pnand %p225, %p226
      %p228 = pneg %p227
      // Predicated region
      $region29: #{tpu_custom_call.1} parent=5 // pred_check
        _
      $region30: #{tpu_custom_call.1} parent=5 // pred_check_branch
        %230 = sbr.rel (%p227) target = $region32
      $region31: #{tpu_custom_call.1} parent=5 // pred_region
        %s231 = ssub.s32 %s20, 1
        %s232 = sand.u32 %s47, 1
        %s233 = scalar_lea.sflag [#allocation3], %s232
        %s234 = sand.u32 %s47, 1
        %s235 = smul.addr %s234, 64
        %s236 = scalar_lea.vmem [#allocation2], %s235
        // Predicated region
        $region33: #{tpu_custom_call.1} parent=31 // pred_check
          %p237 = pneg %p60
        $region34: #{tpu_custom_call.1} parent=31 // pred_check_branch
          %239 = sbr.rel (%p237) target = $region36
        $region35: #{tpu_custom_call.1} parent=31 // pred_region
          %240 = dma.done %s233, 1024
        $region36: #{tpu_custom_call.1} parent=31 // pred_fallthru
          _
        %s241 = sand.u32 %s47, 1
        %s242 = scalar_lea.sflag [#allocation3], %s241
        %s243 = sand.u32 %s47, 1
        %s244 = smul.addr %s243, 64
        %s245 = scalar_lea.vmem [#allocation2], %s244
        %p246 = pneg %p60
        %p247 = pneg %p57
        %p248 = scmp.lt.s32.totalorder %s29, 1
        %s249 = scalar_select %p248, %s29, 1
        %s250 = smul.addr %s249, 8
        %s251 = scalar_lea.vmem %s1, %s250
        %p252 = pneg %p86
        %p253 = pneg %p83
        %p254 = scmp.lt.s32.totalorder %s29, 1
        %s255 = scalar_select %p254, %s29, 1
        %s256 = smul.addr %s255, 4
        %s257 = smul.addr %s256, 8
        %s258 = scalar_lea.vmem %s2, %s257
        %p259 = pneg %p112
        %p260 = pneg %p109
        %p261 = pneg %p140
        %p262 = pneg %p137
        %s263 = sand.u32 %s127, 1
        %s264 = scalar_lea.sflag [#allocation4], %s263
        %s265 = sand.u32 %s127, 1
        %s266 = smul.addr %s265, 64
        %s267 = scalar_lea.vmem [#allocation5], %s266
        %p268 = pneg %p168
        %p269 = pneg %p165
        %s270 = sand.u32 %s155, 1
        %s271 = scalar_lea.sflag [#allocation7], %s270
        %s272 = sand.u32 %s155, 1
        %s273 = smul.addr %s272, 16
        %s274 = scalar_lea.vmem [#allocation6], %s273
        %s275 = smul.u32 2, %s30
        %p276 = scmp.lt.s32.totalorder %s29, 1
        %s277 = scalar_select %p276, %s29, 1
        %s278 = smul.addr %s277, 8
        %s279 = scalar_lea.vmem %s1, %s278
        %p280 = scmp.lt.s32.totalorder %s29, 1
        %s281 = scalar_select %p280, %s29, 1
        %s282 = smul.addr %s281, 4
        %s283 = smul.addr %s282, 8
        %s284 = scalar_lea.vmem %s2, %s283
        %s285 = smul.u32 2, %s30
        %s286 = smul.u32 2, %s30
        %v287 = vld [vmem:[%s236] sm:$0xff]
        %v288 = vld [vmem:[%s236 + $0x8] sm:$0xff]
        %v289 = vld [vmem:[%s236 + $0x10] sm:$0xff]
        %v290 = vld [vmem:[%s236 + $0x18] sm:$0xff]
        %v291 = vld [vmem:[%s236 + $0x20] sm:$0xff]
        %v292 = vld [vmem:[%s236 + $0x28] sm:$0xff]
        %v293 = vld [vmem:[%s236 + $0x30] sm:$0xff]
        %v294 = vld [vmem:[%s236 + $0x38] sm:$0xff]
        %v295 = vld [vmem:[%s279] sm:$0xff]
        %v296 = vld [vmem:[%s284] sm:$0xff]
        %v297 = vld [vmem:[%s284 + $0x8] sm:$0xff]
        %v298 = vld [vmem:[%s284 + $0x10] sm:$0xff]
        %v299 = vld [vmem:[%s284 + $0x18] sm:$0xff]
        %vm300 = vcmask 261120
        %v302 = vsel %vm300, %v295, 0
        %304 = vmatprep.subr.mxu0 %v288
        %305 = vmatpush1.msra.mxu0 %v287
        %306 = vmatprep.subr.mxu0 %v290
        %307 = vmatpush1.msra.mxu0 %v289
        %308 = vmatprep.subr.mxu0 %v292
        %309 = vmatpush1.msra.mxu0 %v291
        %310 = vmatprep.subr.mxu0 %v294
        %311 = vmatpush1.msra.mxu0 %v293
        %312 = vmatprep.subr.mxu0 0.0
        %313 = vmatpush1.msra.mxu0 0.0
        %314 = vmatprep.subr.mxu0 0.0
        %315 = vmatpush1.msra.mxu0 0.0
        %316 = vmatprep.subr.mxu0 0.0
        %317 = vmatpush1.msra.mxu0 0.0
        %318 = vmatprep.subr.mxu0 0.0
        %319 = vmatpush1.msra.mxu0 0.0
        %320 = vmatprep.subr.mxu0 0.0
        %321 = vmatpush1.msra.mxu0 0.0
        %322 = vmatprep.subr.mxu0 0.0
        %323 = vmatpush1.msra.mxu0 0.0
        %324 = vmatprep.subr.mxu0 0.0
        %325 = vmatpush1.msra.mxu0 0.0
        %326 = vmatprep.subr.mxu0 0.0
        %327 = vmatpush1.msra.mxu0 0.0
        %328 = vmatprep.subr.mxu0 0.0
        %329 = vmatpush1.msra.mxu0 0.0
        %330 = vmatprep.subr.mxu0 0.0
        %331 = vmatpush1.msra.mxu0 0.0
        %332 = vmatprep.subr.mxu0 0.0
        %333 = vmatpush1.msra.mxu0 0.0
        %334 = vmatprep.subr.mxu0 0.0
        %335 = vmatpush1.msra.mxu0 0.0
        %336 = vmatprep.subr.mxu0 0.0
        %337 = vmatpush1.msra.mxu0 0.0
        %338 = vmatprep.subr.mxu0 0.0
        %339 = vmatpush1.msra.mxu0 0.0
        %340 = vmatprep.subr.mxu0 0.0
        %341 = vmatpush1.msra.mxu0 0.0
        %342 = vmatprep.subr.mxu0 0.0
        %343 = vmatpush1.msra.mxu0 0.0
        %344 = vmatprep.subr.mxu0 0.0
        %345 = vmatpush1.msra.mxu0 0.0
        %346 = vmatprep.subr.mxu0 0.0
        %347 = vmatpush1.msra.mxu0 0.0
        %348 = vmatprep.subr.mxu0 0.0
        %349 = vmatpush1.msra.mxu0 0.0
        %350 = vmatprep.subr.mxu0 0.0
        %351 = vmatpush1.msra.mxu0 0.0
        %352 = vmatprep.subr.mxu0 0.0
        %353 = vmatpush1.msra.mxu0 0.0
        %354 = vmatprep.subr.mxu0 0.0
        %355 = vmatpush1.msra.mxu0 0.0
        %356 = vmatprep.subr.mxu0 0.0
        %357 = vmatpush1.msra.mxu0 0.0
        %358 = vmatprep.subr.mxu0 0.0
        %359 = vmatpush1.msra.mxu0 0.0
        %360 = vmatprep.subr.mxu0 0.0
        %361 = vmatpush1.msra.mxu0 0.0
        %362 = vmatprep.subr.mxu0 0.0
        %363 = vmatpush1.msra.mxu0 0.0
        %364 = vmatprep.subr.mxu0 0.0
        %365 = vmatpush1.msra.mxu0 0.0
        %366 = vmatprep.subr.mxu0 0.0
        %367 = vmatpush1.msra.mxu0 0.0
        %368 = vmatprep.mubr.f32.mxu0 0.0
        %369 = vmatmul.mubr.f32.gmra.mrb[0].mxu0 %v302
        %v370 = vpop.f32.mrb[0].mxu0
        %v371 = vadd.f32 0.0, %v370
        %v372 = vpop.f32.mrb[0].mxu0
        %v373 = vadd.f32 0.0, %v372
        %374 = vdwg.mxu0
        %v375 = vrot.slane %v371, 4
        %v376 = vmax.f32 %v371, %v375
        %v377 = vrot.slane %v376, 2
        %v378 = vmax.f32 %v376, %v377
        %v379 = vrot.slane %v378, 1
        %v380 = vmax.f32 %v378, %v379
        %v381 = vrot.slane %v373, 4
        %v382 = vmax.f32 %v373, %v381
        %v383 = vrot.slane %v382, 2
        %v384 = vmax.f32 %v382, %v383
        %v385 = vrot.slane %v384, 1
        %v386 = vmax.f32 %v384, %v385
        %v387 = vsub.f32 %v371, %v380
        %v388 = vsub.f32 %v373, %v386
        %v389 = vmul.f32 %v387, 1.442695
        %v390 = vpow.pop %v389
        %v391 = vmul.f32 %v388, 1.442695
        %v392 = vpow.pop %v391
        %v393 = vrot.slane %v390, 4
        %v394 = vadd.f32 %v390, %v393
        %v395 = vrot.slane %v394, 2
        %v396 = vadd.f32 %v394, %v395
        %v397 = vrot.slane %v396, 1
        %v398 = vadd.f32 %v396, %v397
        %v399 = vrot.slane %v392, 4
        %v400 = vadd.f32 %v392, %v399
        %v401 = vrot.slane %v400, 2
        %v402 = vadd.f32 %v400, %v401
        %v403 = vrot.slane %v402, 1
        %v404 = vadd.f32 %v402, %v403
        %v405 = vrcp.pop %v398
        %v406 = vrcp.pop %v404
        %v407 = vmul.f32 %v390, %v405
        %v408 = vmul.f32 %v392, %v406
        %vm409 = vcmask 64512
        %v411 = vsel %vm409, %v296, 0
        %v414 = vsel %vm409, %v297, 0
        %v417 = vsel %vm409, %v298, 0
        %v420 = vsel %vm409, %v299, 0
        %422 = vmatprep.subr.mxu0 %v408
        %423 = vmatpush1.msra.mxu0 %v407
        %424 = vmatprep.subr.mxu0 0.0
        %425 = vmatpush1.msra.mxu0 0.0
        %426 = vmatprep.subr.mxu0 0.0
        %427 = vmatpush1.msra.mxu0 0.0
        %428 = vmatprep.subr.mxu0 0.0
        %429 = vmatpush1.msra.mxu0 0.0
        %430 = vmatprep.subr.mxu0 0.0
        %431 = vmatpush1.msra.mxu0 0.0
        %432 = vmatprep.subr.mxu0 0.0
        %433 = vmatpush1.msra.mxu0 0.0
        %434 = vmatprep.subr.mxu0 0.0
        %435 = vmatpush1.msra.mxu0 0.0
        %436 = vmatprep.subr.mxu0 0.0
        %437 = vmatpush1.msra.mxu0 0.0
        %438 = vmatprep.subr.mxu0 0.0
        %439 = vmatpush1.msra.mxu0 0.0
        %440 = vmatprep.subr.mxu0 0.0
        %441 = vmatpush1.msra.mxu0 0.0
        %442 = vmatprep.subr.mxu0 0.0
        %443 = vmatpush1.msra.mxu0 0.0
        %444 = vmatprep.subr.mxu0 0.0
        %445 = vmatpush1.msra.mxu0 0.0
        %446 = vmatprep.subr.mxu0 0.0
        %447 = vmatpush1.msra.mxu0 0.0
        %448 = vmatprep.subr.mxu0 0.0
        %449 = vmatpush1.msra.mxu0 0.0
        %450 = vmatprep.subr.mxu0 0.0
        %451 = vmatpush1.msra.mxu0 0.0
        %452 = vmatprep.subr.mxu0 0.0
        %453 = vmatpush1.msra.mxu0 0.0
        %454 = vmatprep.subr.mxu0 0.0
        %455 = vmatpush1.msra.mxu0 0.0
        %456 = vmatprep.subr.mxu0 0.0
        %457 = vmatpush1.msra.mxu0 0.0
        %458 = vmatprep.subr.mxu0 0.0
        %459 = vmatpush1.msra.mxu0 0.0
        %460 = vmatprep.subr.mxu0 0.0
        %461 = vmatpush1.msra.mxu0 0.0
        %462 = vmatprep.subr.mxu0 0.0
        %463 = vmatpush1.msra.mxu0 0.0
        %464 = vmatprep.subr.mxu0 0.0
        %465 = vmatpush1.msra.mxu0 0.0
        %466 = vmatprep.subr.mxu0 0.0
        %467 = vmatpush1.msra.mxu0 0.0
        %468 = vmatprep.subr.mxu0 0.0
        %469 = vmatpush1.msra.mxu0 0.0
        %470 = vmatprep.subr.mxu0 0.0
        %471 = vmatpush1.msra.mxu0 0.0
        %472 = vmatprep.subr.mxu0 0.0
        %473 = vmatpush1.msra.mxu0 0.0
        %474 = vmatprep.subr.mxu0 0.0
        %475 = vmatpush1.msra.mxu0 0.0
        %476 = vmatprep.subr.mxu0 0.0
        %477 = vmatpush1.msra.mxu0 0.0
        %478 = vmatprep.subr.mxu0 0.0
        %479 = vmatpush1.msra.mxu0 0.0
        %480 = vmatprep.subr.mxu0 0.0
        %481 = vmatpush1.msra.mxu0 0.0
        %482 = vmatprep.subr.mxu0 0.0
        %483 = vmatpush1.msra.mxu0 0.0
        %484 = vmatprep.subr.mxu0 0.0
        %485 = vmatpush1.msra.mxu0 0.0
        %486 = vmatprep.mubr.f32.mxu0 0.0
        %487 = vmatmul.mubr.f32.gmra.mrb[0].mxu0 %v411
        %v488 = vpop.f32.mrb[0].mxu0
        %v489 = vadd.f32 0.0, %v488
        %v490 = vpop.f32.mrb[0].mxu0
        %v491 = vadd.f32 0.0, %v490
        %492 = vmatprep.mubr.f32.mxu0 0.0
        %493 = vmatmul.mubr.f32.gmra.mrb[0].mxu0 %v414
        %v494 = vpop.f32.mrb[0].mxu0
        %v495 = vadd.f32 0.0, %v494
        %v496 = vpop.f32.mrb[0].mxu0
        %v497 = vadd.f32 0.0, %v496
        %498 = vmatprep.mubr.f32.mxu0 0.0
        %499 = vmatmul.mubr.f32.gmra.mrb[0].mxu0 %v417
        %v500 = vpop.f32.mrb[0].mxu0
        %v501 = vadd.f32 0.0, %v500
        %v502 = vpop.f32.mrb[0].mxu0
        %v503 = vadd.f32 0.0, %v502
        %504 = vmatprep.mubr.f32.mxu0 0.0
        %505 = vmatmul.mubr.f32.gmra.mrb[0].mxu0 %v420
        %v506 = vpop.f32.mrb[0].mxu0
        %v507 = vadd.f32 0.0, %v506
        %v508 = vpop.f32.mrb[0].mxu0
        %v509 = vadd.f32 0.0, %v508
        %510 = vdwg.mxu0
        %511 = vst [vmem:[%s267] sm:$0xff] %v489
        %512 = vst [vmem:[%s267 + $0x8] sm:$0xff] %v491
        %513 = vst [vmem:[%s267 + $0x10] sm:$0xff] %v495
        %514 = vst [vmem:[%s267 + $0x18] sm:$0xff] %v497
        %515 = vst [vmem:[%s267 + $0x20] sm:$0xff] %v501
        %516 = vst [vmem:[%s267 + $0x28] sm:$0xff] %v503
        %517 = vst [vmem:[%s267 + $0x30] sm:$0xff] %v507
        %518 = vst [vmem:[%s267 + $0x38] sm:$0xff] %v509
        %519 = vst [vmem:[%s274] sm:$0xff] %v407
        %520 = vst [vmem:[%s274 + $0x8] sm:$0xff] %v408
        %s521 = sand.u32 %s127, 1
        %s522 = scalar_lea.sflag [#allocation4], %s521
        %s523 = sand.u32 %s127, 1
        %s524 = smul.addr %s523, 64
        %s525 = scalar_lea.vmem [#allocation5], %s524
        %s526 = sand.u32 %s155, 1
        %s527 = scalar_lea.sflag [#allocation7], %s526
        %s528 = sand.u32 %s155, 1
        %s529 = smul.addr %s528, 16
        %s530 = scalar_lea.vmem [#allocation6], %s529
        // Predicated region
        $region37: #{tpu_custom_call.1} parent=31 // pred_check
          %p531 = pneg %p137
        $region38: #{tpu_custom_call.1} parent=31 // pred_check_branch
          %533 = sbr.rel (%p531) target = $region40
        $region39: #{tpu_custom_call.1} parent=31 // pred_region
          %s534 = smul.u32 2, %s30
          %s536 = ssub.s32 1024, 1024
          %537 = vsyncadd %s522, %s536
          %s538 = smul.addr %s29, 8
          %s539 = sadd.s32 %s534, %s538
          %s540 = smul.addr %s539, 128
          %s541 = scalar_lea.hbm %s3, %s540
          %s542 = sshll.u32 %s525, 4
          %s543 = int_to_ptr.vmem [resolvable:$true] %s542
          %548 = dma.vmem_to_hbm [thread:$0]  %s543, 1024, %s541, %s522, 256, 256, 16
        $region40: #{tpu_custom_call.1} parent=31 // pred_fallthru
          _
        // Predicated region
        $region41: #{tpu_custom_call.1} parent=31 // pred_check
          %p549 = pneg %p165
        $region42: #{tpu_custom_call.1} parent=31 // pred_check_branch
          %551 = sbr.rel (%p549) target = $region44
        $region43: #{tpu_custom_call.1} parent=31 // pred_region
          %s552 = smul.u32 2, %s30
          %s554 = ssub.s32 256, 256
          %555 = vsyncadd %s527, %s554
          %s556 = smul.addr %s29, 2
          %s557 = sadd.s32 %s552, %s556
          %s558 = smul.addr %s557, 128
          %s559 = scalar_lea.hbm %s4, %s558
          %s561 = sshll.u32 %s530, 4
          %s562 = int_to_ptr.vmem [resolvable:$true] %s561
          %564 = dma.vmem_to_hbm [thread:$0]  %s562, 256, %s559, %s527
        $region44: #{tpu_custom_call.1} parent=31 // pred_fallthru
          _
      $region32: #{tpu_custom_call.1} parent=5 // pred_fallthru
        _
      %p565 = scmp.le.s32.totalorder 2, %s20
      // Predicated region
      $region45: #{tpu_custom_call.1} parent=5 // pred_check
        %p566 = pneg %p565
      $region46: #{tpu_custom_call.1} parent=5 // pred_check_branch
        %568 = sbr.rel (%p566) target = $region48
      $region47: #{tpu_custom_call.1} parent=5 // pred_region
        %s569 = ssub.s32 %s20, 2
        // Predicated region
        $region49: #{tpu_custom_call.1} parent=47 // pred_check
          %p570 = pneg %p143
        $region50: #{tpu_custom_call.1} parent=47 // pred_check_branch
          %572 = sbr.rel (%p570) target = $region52
        $region51: #{tpu_custom_call.1} parent=47 // pred_region
          %s573 = sand.u32 %s128, 1
          %s574 = scalar_lea.sflag [#allocation4], %s573
          %s575 = sand.u32 %s128, 1
          %s576 = smul.addr %s575, 64
          %s577 = scalar_lea.vmem [#allocation5], %s576
          %578 = dma.done %s574, 1024
        $region52: #{tpu_custom_call.1} parent=47 // pred_fallthru
          _
        // Predicated region
        $region53: #{tpu_custom_call.1} parent=47 // pred_check
          %p579 = pneg %p171
        $region54: #{tpu_custom_call.1} parent=47 // pred_check_branch
          %581 = sbr.rel (%p579) target = $region56
        $region55: #{tpu_custom_call.1} parent=47 // pred_region
          %s582 = sand.u32 %s156, 1
          %s583 = scalar_lea.sflag [#allocation7], %s582
          %s584 = sand.u32 %s156, 1
          %s585 = smul.addr %s584, 16
          %s586 = scalar_lea.vmem [#allocation6], %s585
          %587 = dma.done %s583, 256
        $region56: #{tpu_custom_call.1} parent=47 // pred_fallthru
          _
      $region48: #{tpu_custom_call.1} parent=5 // pred_fallthru
        _
    $region6: #{tpu_custom_call.1} parent=1 // loop_footer
      %s24 = sadd.s32 1, %s20
    $region7: #{tpu_custom_call.1} parent=1 // loop_footer_branch
      %19 = sbr.rel target = $region3
    $region8: #{tpu_custom_call.1} parent=1 // loop_exit
      _
    %588 = vsyncpa [#allocation3], 1
    %s589 = scalar_lea.sflag [#allocation3], 1
    %590 = vsyncpa %s589, 1
    %591 = vsyncpa [#allocation4], 1
    %s592 = scalar_lea.sflag [#allocation4], 1
    %593 = vsyncpa %s592, 1
    %594 = vsyncpa [#allocation7], 1
    %s595 = scalar_lea.sflag [#allocation7], 1
    %596 = vsyncpa %s595, 1

</llo_original>
